<compile_context>
chip_gen: v7x
topology: tpu7x:2x2x1
jax: 0.10.0
libtpu: 0.0.40
codegen_flags: <defaults>
</compile_context>

<pallas_src>
import functools
import math

import jax
import jax.numpy as jnp
from jax import lax
from jax.experimental import pallas as pl
from jax.experimental.pallas import tpu as pltpu

_LANE = 128


def _round_up(v, m):
    return ((v + m - 1) // m) * m


def _pad_to(a, target_shape):
    pads = [(0, t - s) for s, t in zip(a.shape, target_shape)]
    if any(hi for _, hi in pads):
        a = jnp.pad(a, pads)
    return a


def _self_attention_kernel(x_ref, wqkv_ref, o_ref, *, norm_fact, n_valid,
                           dkp, dvp, approx_recip):
    # x_ref:    (Bt, Np, Dqp)  block of (padded) batch elements
    # wqkv_ref: (Dqp, 2*Dkp + Dvp)  fused projection weight (shared)
    # o_ref:    (Bt, Np, Dvp)
    bt, npad, dqp = x_ref.shape

    # Collapse (Bt, Np) -> rows; Np is a multiple of 128 (hence of the 8/16
    # sublane pack), so this reshape is a layout no-op and the projection
    # matmul gets a tall M dimension.
    x2d = x_ref[...].reshape(bt * npad, dqp)

    # One fused QKV projection (single MXU weight load, wide output).
    qkv = jnp.dot(x2d, wqkv_ref[...], preferred_element_type=jnp.float32)

    # Lane-aligned (128-multiple) static column slices -> zero-cost views.
    q = qkv[:, :dkp] * norm_fact                 # fold 1/sqrt(dim_k) into q
    k = qkv[:, dkp:2 * dkp]
    v = qkv[:, 2 * dkp:2 * dkp + dvp]

    # Back to the input dtype for the next MXU passes (bf16 fast path when
    # inputs are bf16; no-op for f32 inputs).
    q = q.astype(x_ref.dtype).reshape(bt, npad, dkp)
    k = k.astype(x_ref.dtype).reshape(bt, npad, dkp)
    v = v.astype(x_ref.dtype).reshape(bt, npad, dvp)

    # Scores: contract the last dims of q and k directly (no k.T materialized).
    dist = lax.dot_general(
        q, k, dimension_numbers=(((2,), (2,)), ((0,), (0,))),
        preferred_element_type=jnp.float32)      # (Bt, Np, Np)

    # Mask padded key columns (sequence padded up to a lane multiple).
    if n_valid != npad:
        key_idx = lax.broadcasted_iota(jnp.int32, (1, npad, npad), 2)
        dist = jnp.where(key_idx < n_valid, dist, -1e30)

    # Numerically-stable softmax numerator in f32.
    m = jnp.max(dist, axis=-1, keepdims=True)
    e = jnp.exp(dist - m)
    denom = jnp.sum(e, axis=-1, keepdims=True)   # (Bt, Np, 1)

    # Unnormalized PV matmul; normalize the (Np, Dv) output rather than the
    # (Np, Np) probabilities.
    att = lax.dot_general(
        e.astype(v.dtype), v, dimension_numbers=(((2,), (1,)), ((0,), (0,))),
        preferred_element_type=jnp.float32)      # (Bt, Np, Dvp)

    if approx_recip:
        out = att * pl.reciprocal(denom, approx=True)   # bf16 path: EUP approx
    else:
        out = att / denom                                # f32 path: exact
    o_ref[...] = out.astype(o_ref.dtype)


def self_attention(x, wq, wk, wv, *, block_b=None):
    """x: (B, N, Dq); wq/wk: (Dq, Dk); wv: (Dq, Dv) -> (B, N, Dv).

    Weights are stored pre-transposed as (in, out) so q = x @ wq matches
    nn.Linear(dim_q, dim_k, bias=False)(x).
    """
    B, N, Dq = x.shape
    Dk = wq.shape[1]
    Dv = wv.shape[1]
    assert wq.shape == (Dq, Dk) and wk.shape == (Dq, Dk) and wv.shape == (Dq, Dv)
    norm_fact = 1.0 / math.sqrt(Dk)
    itemsize = jnp.dtype(x.dtype).itemsize

    # Lane-dense padding: feature dims AND the sequence dim to multiples of
    # 128.  Zero rows/cols are inert in every contraction; padded key columns
    # are masked in-kernel and padded batch/seq rows are sliced off below.
    Dqp, Dkp, Dvp = (_round_up(d, _LANE) for d in (Dq, Dk, Dv))
    Np = _round_up(N, _LANE)

    # Fused (padded) QKV weight: cols [0,Dkp)=Wq, [Dkp,2Dkp)=Wk, [2Dkp,..)=Wv.
    wqkv = jnp.concatenate(
        [_pad_to(wq, (Dqp, Dkp)),
         _pad_to(wk, (Dqp, Dkp)),
         _pad_to(wv, (Dqp, Dvp))], axis=1)
    qkv_cols = 2 * Dkp + Dvp

    # --- per-grid-step VMEM footprint model --------------------------------
    def footprint(bb):
        rows = bb * Np
        f = 2 * rows * Dqp * itemsize        # x block (double-buffered)
        f += 2 * rows * Dvp * itemsize       # out block (double-buffered)
        f += 2 * Dqp * qkv_cols * itemsize   # fused weight (double-buffered)
        f += rows * qkv_cols * 4             # qkv f32 accumulation
        f += rows * qkv_cols * itemsize      # q/k/v recast copies
        f += 2 * bb * Np * Np * 4            # dist + e in f32
        f += bb * Np * Np * itemsize         # e recast for the PV matmul
        f += bb * Np * Dvp * 4               # att f32 accumulator
        return f

    try:
        vmem_cap = int(pltpu.get_tpu_info().vmem_capacity_bytes)
    except Exception:
        vmem_cap = 64 << 20                  # conservative (v7x per-TC) fallback
    budget = min(vmem_cap // 3, 48 << 20)

    # Keep the grid at >=4 steps when B allows (>=2 so a v7x megacore can
    # shard the 'parallel' axis); within that, take the largest block_b that
    # fits the VMEM budget.
    if B >= 4:
        max_bb = -(-B // 4)
    elif B >= 2:
        max_bb = -(-B // 2)
    else:
        max_bb = 1
    if block_b is None:
        block_b = 1
        for bb in range(max_bb, 0, -1):
            if footprint(bb) <= budget:
                block_b = bb
                break
    block_b = max(1, min(block_b, B))

    # Pad the batch up to a multiple of block_b instead of shrinking block_b
    # to a divisor of B (padded rows are mathematically inert, sliced off).
    Bp = _round_up(B, block_b)
    xp = _pad_to(x, (Bp, Np, Dqp))
    grid = (Bp // block_b,)

    vmem_limit = int(min(vmem_cap * 3 // 4,
                         max(32 << 20, footprint(block_b) + (8 << 20))))

    kernel = functools.partial(
        _self_attention_kernel,
        norm_fact=norm_fact, n_valid=N, dkp=Dkp, dvp=Dvp,
        approx_recip=(x.dtype == jnp.bfloat16))

    out = pl.pallas_call(
        kernel,
        out_shape=jax.ShapeDtypeStruct((Bp, Np, Dvp), x.dtype),
        grid_spec=pltpu.PrefetchScalarGridSpec(
            num_scalar_prefetch=0,
            grid=grid,
            in_specs=[
                pl.BlockSpec((block_b, Np, Dqp), lambda b: (b, 0, 0)),  # x block
                pl.BlockSpec((Dqp, qkv_cols), lambda b: (0, 0)),        # fused W
            ],
            out_specs=pl.BlockSpec((block_b, Np, Dvp), lambda b: (b, 0, 0)),
        ),
        compiler_params=pltpu.CompilerParams(
            dimension_semantics=("parallel",),
            vmem_limit_bytes=vmem_limit,
        ),
    )(xp, wqkv)

    # Strip batch / sequence / feature padding.
    return out[:B, :N, :Dv]


def _reference(x, wq, wk, wv):
    q = jnp.einsum("bnd,dk->bnk", x, wq)
    k = jnp.einsum("bnd,dk->bnk", x, wk)
    v = jnp.einsum("bnd,dk->bnk", x, wv)
    dist = jnp.einsum("bik,bjk->bij", q, k) / math.sqrt(wq.shape[1])
    p = jax.nn.softmax(dist, axis=-1)
    return jnp.einsum("bij,bjd->bid", p, v)


if __name__ == "__main__":
    # Small deterministic shapes consistent with the module's forward:
    # batch=2, seq=8, dim_q=dim_k=dim_v=32.
    B, N, DIM_Q, DIM_K, DIM_V = 2, 8, 32, 32, 32

    key = jax.random.PRNGKey(0)
    kx, kq, kk, kv = jax.random.split(key, 4)

    x = jax.random.normal(kx, (B, N, DIM_Q), dtype=jnp.float32)
    # nn.Linear default init: U(-1/sqrt(in_features), +1/sqrt(in_features));
    # weights stored pre-transposed as (in, out) for x @ W.
    bound = 1.0 / math.sqrt(DIM_Q)
    wq = jax.random.uniform(kq, (DIM_Q, DIM_K), jnp.float32, -bound, bound)
    wk = jax.random.uniform(kk, (DIM_Q, DIM_K), jnp.float32, -bound, bound)
    wv = jax.random.uniform(kv, (DIM_Q, DIM_V), jnp.float32, -bound, bound)

    out = jax.block_until_ready(self_attention(x, wq, wk, wv))
    ref = _reference(x, wq, wk, wv)

    assert out.shape == (B, N, DIM_V)
    # Tolerance covers the MXU's default (single bf16 pass) matmul precision
    # for f32 operands; a real softmax/masking/matmul bug would be orders of
    # magnitude larger.
    assert jnp.allclose(out, ref, atol=2e-3, rtol=2e-3), "mismatch vs. JAX reference"

    print("KERNEL_OK")
</pallas_src>

<mosaic_0001>
module attributes {stable_mosaic.version = 11 : i64} {
  func.func @_self_attention_kernel(%arg0: i32, %arg1: memref<1x128x128xf32, #tpu.memory_space<vmem>>, %arg2: memref<128x384xf32, #tpu.memory_space<vmem>>, %arg3: memref<1x128x128xf32, #tpu.memory_space<vmem>>) attributes {dimension_semantics = [#tpu.dimension_semantics<parallel>], iteration_bounds = array<i64: 2>, scalar_prefetch = 0 : i64, scratch_operands = 0 : i64, tpu.core_type = #tpu.core_type<tc>, window_params = [{transform_indices = @transform_0, window_bounds = array<i64: 1, 128, 128>}, {pipeline_mode = #tpu.pipeline_mode<synchronous>, transform_indices = @transform_1, window_bounds = array<i64: 128, 384>}, {transform_indices = @transform_2, window_bounds = array<i64: 1, 128, 128>}]} {
    %c0 = arith.constant 0 : index
    %c0_0 = arith.constant 0 : index
    %c0_1 = arith.constant 0 : index
    %0 = vector.load %arg1[%c0, %c0_0, %c0_1] : memref<1x128x128xf32, #tpu.memory_space<vmem>>, vector<1x128x128xf32>
    %1 = vector.shape_cast %0 : vector<1x128x128xf32> to vector<128x128xf32>
    %c0_2 = arith.constant 0 : index
    %c0_3 = arith.constant 0 : index
    %2 = vector.load %arg2[%c0_2, %c0_3] : memref<128x384xf32, #tpu.memory_space<vmem>>, vector<128x384xf32>
    %cst = arith.constant dense<0.000000e+00> : vector<128x384xf32>
    %3 = tpu.matmul %1, %2, %cst {dimension_numbers = #tpu.dot_dimension_numbers<[1], [0], [0], [1], [0, 0, 1, 1], [], []>} : vector<128x128xf32>, vector<128x384xf32>, vector<128x384xf32> -> vector<128x384xf32>
    %4 = vector.extract_strided_slice %3 {offsets = [0, 0], sizes = [128, 128], strides = [1, 1]} : vector<128x384xf32> to vector<128x128xf32>
    %cst_4 = arith.constant 0.176776692 : f32
    %5 = vector.broadcast %cst_4 : f32 to vector<128x128xf32>
    %6 = arith.mulf %4, %5 : vector<128x128xf32>
    %7 = vector.extract_strided_slice %3 {offsets = [0, 128], sizes = [128, 128], strides = [1, 1]} : vector<128x384xf32> to vector<128x128xf32>
    %8 = vector.extract_strided_slice %3 {offsets = [0, 256], sizes = [128, 128], strides = [1, 1]} : vector<128x384xf32> to vector<128x128xf32>
    %9 = vector.shape_cast %6 : vector<128x128xf32> to vector<1x128x128xf32>
    %10 = vector.shape_cast %7 : vector<128x128xf32> to vector<1x128x128xf32>
    %11 = vector.shape_cast %8 : vector<128x128xf32> to vector<1x128x128xf32>
    %cst_5 = arith.constant dense<0.000000e+00> : vector<1x128x128xf32>
    %12 = tpu.matmul %9, %10, %cst_5 {dimension_numbers = #tpu.dot_dimension_numbers<[2], [2], [1], [1], [0, 0, 0, 1, 1, 1], [0], [0]>} : vector<1x128x128xf32>, vector<1x128x128xf32>, vector<1x128x128xf32> -> vector<1x128x128xf32>
    %13 = tpu.iota {dimensions = array<i32: 2>} : vector<1x128x128xi32>
    %c8_i32 = arith.constant 8 : i32
    %14 = vector.broadcast %c8_i32 : i32 to vector<1x128x128xi32>
    %15 = arith.cmpi slt, %13, %14 : vector<1x128x128xi32>
    %cst_6 = arith.constant -1.000000e+30 : f32
    %16 = vector.broadcast %cst_6 : f32 to vector<1x128x128xf32>
    %17 = arith.select %15, %12, %16 : vector<1x128x128xi1>, vector<1x128x128xf32>
    %cst_7 = arith.constant dense<0xFF800000> : vector<1x128xf32>
    %18 = vector.multi_reduction <maximumf>, %17, %cst_7 [2] : vector<1x128x128xf32> to vector<1x128xf32>
    %19 = vector.shape_cast %18 : vector<1x128xf32> to vector<1x128x1xf32>
    %20 = vector.broadcast %19 : vector<1x128x1xf32> to vector<1x128x128xf32>
    %21 = arith.subf %17, %20 : vector<1x128x128xf32>
    %22 = math.exp %21 : vector<1x128x128xf32>
    %cst_8 = arith.constant dense<0.000000e+00> : vector<1x128xf32>
    %23 = vector.multi_reduction <add>, %22, %cst_8 [2] : vector<1x128x128xf32> to vector<1x128xf32>
    %24 = vector.shape_cast %23 : vector<1x128xf32> to vector<1x128x1xf32>
    %cst_9 = arith.constant dense<0.000000e+00> : vector<1x128x128xf32>
    %25 = tpu.matmul %22, %11, %cst_9 {dimension_numbers = #tpu.dot_dimension_numbers<[2], [1], [1], [2], [0, 0, 0, 1, 1, 2], [0], [0]>} : vector<1x128x128xf32>, vector<1x128x128xf32>, vector<1x128x128xf32> -> vector<1x128x128xf32>
    %26 = vector.broadcast %24 : vector<1x128x1xf32> to vector<1x128x128xf32>
    %27 = arith.divf %25, %26 : vector<1x128x128xf32>
    %c0_10 = arith.constant 0 : index
    %c0_11 = arith.constant 0 : index
    %c0_12 = arith.constant 0 : index
    %28 = vector.load %arg3[%c0_10, %c0_11, %c0_12] : memref<1x128x128xf32, #tpu.memory_space<vmem>>, vector<1x128x128xf32>
    tpu.vector_store %arg3[%c0_10, %c0_11, %c0_12], %27 {strides = array<i32>} : memref<1x128x128xf32, #tpu.memory_space<vmem>>, vector<1x128x128xf32>,
    return
  }
  func.func @transform_0(%arg0: i32) -> (i32, i32, i32) {
    %c0_i32 = arith.constant 0 : i32
    %c0_i32_0 = arith.constant 0 : i32
    %c0_i32_1 = arith.constant 0 : i32
    return %arg0, %c0_i32, %c0_i32_0 : i32, i32, i32
  }
  func.func @transform_1(%arg0: i32) -> (i32, i32) {
    %c0_i32 = arith.constant 0 : i32
    %c0_i32_0 = arith.constant 0 : i32
    %c0_i32_1 = arith.constant 0 : i32
    return %c0_i32, %c0_i32_0 : i32, i32
  }
  func.func @transform_2(%arg0: i32) -> (i32, i32, i32) {
    %c0_i32 = arith.constant 0 : i32
    %c0_i32_0 = arith.constant 0 : i32
    %c0_i32_1 = arith.constant 0 : i32
    return %arg0, %c0_i32, %c0_i32_0 : i32, i32, i32
  }
}

</mosaic_0001>

<llo_original>
// kernel: tpu_custom_call.1
$region0: #{tpu_custom_call.1}
  #allocation0 [shape = 'u32[]', space=smem, size = 0x4, offset = 0x4, fixed_abs, tag = 'smem constant byte address 0x4 - core index']
  #allocation1 [shape = 'u32[144,128]{1,0:T(1,128)}', space=vmem, size = 0x12000, scoped, tag = 'internal scratch']
  %s0 = inlined_call_operand.hbm [shape: f32[2,128,128], index: 0, kind: input, shape index: {}]
  %s1 = inlined_call_operand.hbm [shape: f32[128,384], index: 1, kind: input, shape index: {}]
  %s2 = inlined_call_operand.hbm [shape: f32[2,128,128], index: 2, kind: output, shape index: {}]
  %s3 = sld [smem:[#allocation0]]
  $region49: #{tpu_custom_call.1} parent=0
    _
  %s5 = ssub.s32 1, %s3
  %s6 = scalar_select 0, %s5, %s3
  $region1: #{tpu_custom_call.1} parent=0
    #allocation2 [shape = 'u8[131072]{0}', space=vmem, size = 0x20000, scoped, tag = 'input window, operand 0']
    #allocation3 [shape = 's32[2]{0}', space=sflag, size = 0x8, scoped, tag = 'scoped memory for tpu_custom_call.1']
    #allocation4 [shape = 's32[2]{0}', space=sflag, size = 0x8, scoped, tag = 'scoped memory for tpu_custom_call.1']
    #allocation5 [shape = 'u8[196608]{0}', space=vmem, size = 0x30000, scoped, tag = 'input window, operand 1, single buffered']
    #allocation6 [shape = 's32[1]{0}', space=sflag, size = 0x4, scoped, tag = 'scoped memory for tpu_custom_call.1']
    #allocation7 [shape = 'u8[131072]{0}', space=vmem, size = 0x20000, scoped, tag = 'output window, operand 0']
    %7 = vsyncpa [#allocation3], 0
    %s8 = scalar_lea.sflag [#allocation3], 1
    %9 = vsyncpa %s8, 0
    %10 = vsyncpa [#allocation6], 0
    %11 = vsyncpa [#allocation4], 0
    %s12 = scalar_lea.sflag [#allocation4], 1
    %13 = vsyncpa %s12, 0
    loop: start=0, step=1, limit=4
    $region2: #{tpu_custom_call.1} parent=1 // loop_pre_header
      _
    $region3: #{tpu_custom_call.1} parent=1 // loop_header
      %s15 = sphi 0, %s19
      %p16 = scmp.ge.s32.totalorder %s15, 4
      %s25 = sphi 0, %s27
      %s28 = sphi 0, %s25
      %s29 = sphi 0, %s28
      %s45 = sphi 0, %s29
      %s49 = sphi 0, %s49
      %s51 = sphi 0, %s49
      %s52 = sphi 0, %s51
      %s66 = sphi 0, %s52
      %s72 = sphi 0, %s74
      %s75 = sphi 0, %s72
      %s76 = sphi 0, %s75
      %s92 = sphi 0, %s76
    $region4: #{tpu_custom_call.1} parent=1 // loop_header_branch
      %18 = sbr.rel (%p16) target = $region8
    $region5: #{tpu_custom_call.1} parent=1 // loop_body
      %s20 = ssub.s32 %s15, 1
      %s21 = ssub.s32 %s15, 2
      %s22 = sadd.s32 %s15, 1
      %s23 = ssub.s32 %s15, %s22
      %p24 = scmp.eq.s32.totalorder %s23, 0
      %s26 = sadd.s32 %s25, 1
      %s27 = scalar_select %p24, %s25, %s26
      %p30 = pneg %p24
      %p31 = scmp.eq.s32.totalorder %s15, 1
      %p32 = por %p30, %p31
      %p33 = scmp.ne.s32.totalorder %s25, %s28
      %p34 = scmp.eq.s32.totalorder %s15, 0
      %p35 = por %p33, %p34
      %p36 = scmp.ne.s32.totalorder %s25, %s28
      %p37 = scmp.eq.s32.totalorder %s20, 1
      %p38 = por %p36, %p37
      %p39 = scmp.ne.s32.totalorder %s28, %s29
      %p40 = scmp.eq.s32.totalorder %s20, 0
      %p41 = por %p39, %p40
      %p42 = scmp.ne.s32.totalorder %s28, %s29
      %p43 = scmp.eq.s32.totalorder %s21, 1
      %p44 = por %p42, %p43
      %p46 = scmp.ne.s32.totalorder %s29, %s45
      %p47 = scmp.eq.s32.totalorder %s21, 0
      %p48 = por %p46, %p47
      %s50 = sadd.s32 %s49, 1
      %p53 = scmp.eq.s32.totalorder %s15, 1
      %p54 = scmp.ne.s32.totalorder %s49, %s51
      %p55 = scmp.eq.s32.totalorder %s15, 0
      %p56 = por %p54, %p55
      %p57 = scmp.ne.s32.totalorder %s49, %s51
      %p58 = scmp.eq.s32.totalorder %s20, 1
      %p59 = por %p57, %p58
      %p60 = scmp.ne.s32.totalorder %s51, %s52
      %p61 = scmp.eq.s32.totalorder %s20, 0
      %p62 = por %p60, %p61
      %p63 = scmp.ne.s32.totalorder %s51, %s52
      %p64 = scmp.eq.s32.totalorder %s21, 1
      %p65 = por %p63, %p64
      %p67 = scmp.ne.s32.totalorder %s52, %s66
      %p68 = scmp.eq.s32.totalorder %s21, 0
      %p69 = por %p67, %p68
      %s70 = ssub.s32 %s15, %s22
      %p71 = scmp.eq.s32.totalorder %s70, 0
      %s73 = sadd.s32 %s72, 1
      %s74 = scalar_select %p71, %s72, %s73
      %p77 = pneg %p71
      %p78 = scmp.eq.s32.totalorder %s15, 1
      %p79 = por %p77, %p78
      %p80 = scmp.ne.s32.totalorder %s72, %s75
      %p81 = scmp.eq.s32.totalorder %s15, 0
      %p82 = por %p80, %p81
      %p83 = scmp.ne.s32.totalorder %s72, %s75
      %p84 = scmp.eq.s32.totalorder %s20, 1
      %p85 = por %p83, %p84
      %p86 = scmp.ne.s32.totalorder %s75, %s76
      %p87 = scmp.eq.s32.totalorder %s20, 0
      %p88 = por %p86, %p87
      %p89 = scmp.ne.s32.totalorder %s75, %s76
      %p90 = scmp.eq.s32.totalorder %s21, 1
      %p91 = por %p89, %p90
      %p93 = scmp.ne.s32.totalorder %s76, %s92
      %p94 = scmp.eq.s32.totalorder %s21, 0
      %p95 = por %p93, %p94
      %p96 = scmp.le.s32.totalorder 1, %s15
      %p97 = scmp.lt.s32.totalorder %s15, 3
      %p98 = pnand %p96, %p97
      %p99 = pneg %p98
      // Predicated region
      $region9: #{tpu_custom_call.1} parent=5 // pred_check
        _
      $region10: #{tpu_custom_call.1} parent=5 // pred_check_branch
        %101 = sbr.rel (%p98) target = $region12
      $region11: #{tpu_custom_call.1} parent=5 // pred_region
        %s102 = ssub.s32 %s15, 1
        // Predicated region
        $region13: #{tpu_custom_call.1} parent=11 // pred_check
          %p103 = pneg %p62
        $region14: #{tpu_custom_call.1} parent=11 // pred_check_branch
          %105 = sbr.rel (%p103) target = $region16
        $region15: #{tpu_custom_call.1} parent=11 // pred_region
          %s107 = ssub.s32 6144, 6144
          %108 = vsyncadd [#allocation6], %s107
          %s109 = sshll.u32 [#allocation5], 4
          %s110 = int_to_ptr.vmem [resolvable:$true] %s109
          %115 = dma.hbm_to_vmem [thread:$0]  %s1, 6144, %s110, [#allocation6], 384, 384, 24
        $region16: #{tpu_custom_call.1} parent=11 // pred_fallthru
          _
      $region12: #{tpu_custom_call.1} parent=5 // pred_fallthru
        _
      %p116 = scmp.lt.s32.totalorder %s15, 2
      // Predicated region
      $region17: #{tpu_custom_call.1} parent=5 // pred_check
        %p117 = pneg %p116
      $region18: #{tpu_custom_call.1} parent=5 // pred_check_branch
        %119 = sbr.rel (%p117) target = $region20
      $region19: #{tpu_custom_call.1} parent=5 // pred_region
        // Predicated region
        $region21: #{tpu_custom_call.1} parent=19 // pred_check
          %p120 = pneg %p35
        $region22: #{tpu_custom_call.1} parent=19 // pred_check_branch
          %122 = sbr.rel (%p120) target = $region24
        $region23: #{tpu_custom_call.1} parent=19 // pred_region
          %s123 = sand.u32 %s25, 1
          %s124 = scalar_lea.sflag [#allocation3], %s123
          %s125 = sand.u32 %s25, 1
          %s126 = smul.addr %s125, 128
          %s127 = scalar_lea.vmem [#allocation2], %s126
          %s129 = ssub.s32 2048, 2048
          %130 = vsyncadd %s124, %s129
          %s131 = smul.addr %s15, 16
          %s132 = smul.addr %s131, 128
          %s133 = scalar_lea.hbm %s0, %s132
          %s134 = sshll.u32 %s127, 4
          %s135 = int_to_ptr.vmem [resolvable:$true] %s134
          %140 = dma.hbm_to_vmem [thread:$0]  %s133, 2048, %s135, %s124, 128, 128, 8
        $region24: #{tpu_custom_call.1} parent=19 // pred_fallthru
          _
      $region20: #{tpu_custom_call.1} parent=5 // pred_fallthru
        _
      %p141 = scmp.le.s32.totalorder 1, %s15
      %p142 = scmp.lt.s32.totalorder %s15, 3
      %p143 = pnand %p141, %p142
      %p144 = pneg %p143
      // Predicated region
      $region25: #{tpu_custom_call.1} parent=5 // pred_check
        _
      $region26: #{tpu_custom_call.1} parent=5 // pred_check_branch
        %146 = sbr.rel (%p143) target = $region28
      $region27: #{tpu_custom_call.1} parent=5 // pred_region
        %s147 = ssub.s32 %s15, 1
        %s148 = sand.u32 %s28, 1
        %s149 = scalar_lea.sflag [#allocation3], %s148
        %s150 = sand.u32 %s28, 1
        %s151 = smul.addr %s150, 128
        %s152 = scalar_lea.vmem [#allocation2], %s151
        // Predicated region
        $region29: #{tpu_custom_call.1} parent=27 // pred_check
          %p153 = pneg %p41
        $region30: #{tpu_custom_call.1} parent=27 // pred_check_branch
          %155 = sbr.rel (%p153) target = $region32
        $region31: #{tpu_custom_call.1} parent=27 // pred_region
          %156 = dma.done %s149, 2048
        $region32: #{tpu_custom_call.1} parent=27 // pred_fallthru
          _
        // Predicated region
        $region33: #{tpu_custom_call.1} parent=27 // pred_check
          %p157 = pneg %p62
        $region34: #{tpu_custom_call.1} parent=27 // pred_check_branch
          %159 = sbr.rel (%p157) target = $region36
        $region35: #{tpu_custom_call.1} parent=27 // pred_region
          %160 = dma.done [#allocation6], 6144
        $region36: #{tpu_custom_call.1} parent=27 // pred_fallthru
          _
        %s161 = sand.u32 %s28, 1
        %s162 = scalar_lea.sflag [#allocation3], %s161
        %s163 = sand.u32 %s28, 1
        %s164 = smul.addr %s163, 128
        %s165 = scalar_lea.vmem [#allocation2], %s164
        %p166 = pneg %p41
        %p167 = pneg %p38
        %p168 = pneg %p62
        %p169 = pneg %p59
        %p170 = pneg %p88
        %p171 = pneg %p85
        %s172 = sand.u32 %s75, 1
        %s173 = scalar_lea.sflag [#allocation4], %s172
        %s174 = sand.u32 %s75, 1
        %s175 = smul.addr %s174, 128
        %s176 = scalar_lea.vmem [#allocation7], %s175
        %v177 = vld [vmem:[%s152] sm:$0xff]
        %v178 = vld [vmem:[%s152 + $0x8] sm:$0xff]
        %v179 = vld [vmem:[%s152 + $0x10] sm:$0xff]
        %v180 = vld [vmem:[%s152 + $0x18] sm:$0xff]
        %v181 = vld [vmem:[%s152 + $0x20] sm:$0xff]
        %v182 = vld [vmem:[%s152 + $0x28] sm:$0xff]
        %v183 = vld [vmem:[%s152 + $0x30] sm:$0xff]
        %v184 = vld [vmem:[%s152 + $0x38] sm:$0xff]
        %v185 = vld [vmem:[%s152 + $0x40] sm:$0xff]
        %v186 = vld [vmem:[%s152 + $0x48] sm:$0xff]
        %v187 = vld [vmem:[%s152 + $0x50] sm:$0xff]
        %v188 = vld [vmem:[%s152 + $0x58] sm:$0xff]
        %v189 = vld [vmem:[%s152 + $0x60] sm:$0xff]
        %v190 = vld [vmem:[%s152 + $0x68] sm:$0xff]
        %v191 = vld [vmem:[%s152 + $0x70] sm:$0xff]
        %v192 = vld [vmem:[%s152 + $0x78] sm:$0xff]
        %v193 = vld [vmem:[#allocation5] sm:$0xff]
        %v194 = vld [vmem:[#allocation5 + $0x8] sm:$0xff]
        %v195 = vld [vmem:[#allocation5 + $0x10] sm:$0xff]
        %v196 = vld [vmem:[#allocation5 + $0x18] sm:$0xff]
        %v197 = vld [vmem:[#allocation5 + $0x20] sm:$0xff]
        %v198 = vld [vmem:[#allocation5 + $0x28] sm:$0xff]
        %v199 = vld [vmem:[#allocation5 + $0x30] sm:$0xff]
        %v200 = vld [vmem:[#allocation5 + $0x38] sm:$0xff]
        %v201 = vld [vmem:[#allocation5 + $0x40] sm:$0xff]
        %v202 = vld [vmem:[#allocation5 + $0x48] sm:$0xff]
        %v203 = vld [vmem:[#allocation5 + $0x50] sm:$0xff]
        %v204 = vld [vmem:[#allocation5 + $0x58] sm:$0xff]
        %v205 = vld [vmem:[#allocation5 + $0x60] sm:$0xff]
        %v206 = vld [vmem:[#allocation5 + $0x68] sm:$0xff]
        %v207 = vld [vmem:[#allocation5 + $0x70] sm:$0xff]
        %v208 = vld [vmem:[#allocation5 + $0x78] sm:$0xff]
        %v209 = vld [vmem:[#allocation5 + $0x80] sm:$0xff]
        %v210 = vld [vmem:[#allocation5 + $0x88] sm:$0xff]
        %v211 = vld [vmem:[#allocation5 + $0x90] sm:$0xff]
        %v212 = vld [vmem:[#allocation5 + $0x98] sm:$0xff]
        %v213 = vld [vmem:[#allocation5 + $0xa0] sm:$0xff]
        %v214 = vld [vmem:[#allocation5 + $0xa8] sm:$0xff]
        %v215 = vld [vmem:[#allocation5 + $0xb0] sm:$0xff]
        %v216 = vld [vmem:[#allocation5 + $0xb8] sm:$0xff]
        %v217 = vld [vmem:[#allocation5 + $0xc0] sm:$0xff]
        %v218 = vld [vmem:[#allocation5 + $0xc8] sm:$0xff]
        %v219 = vld [vmem:[#allocation5 + $0xd0] sm:$0xff]
        %v220 = vld [vmem:[#allocation5 + $0xd8] sm:$0xff]
        %v221 = vld [vmem:[#allocation5 + $0xe0] sm:$0xff]
        %v222 = vld [vmem:[#allocation5 + $0xe8] sm:$0xff]
        %v223 = vld [vmem:[#allocation5 + $0xf0] sm:$0xff]
        %v224 = vld [vmem:[#allocation5 + $0xf8] sm:$0xff]
        %v225 = vld [vmem:[#allocation5 + $0x100] sm:$0xff]
        %v226 = vld [vmem:[#allocation5 + $0x108] sm:$0xff]
        %v227 = vld [vmem:[#allocation5 + $0x110] sm:$0xff]
        %v228 = vld [vmem:[#allocation5 + $0x118] sm:$0xff]
        %v229 = vld [vmem:[#allocation5 + $0x120] sm:$0xff]
        %v230 = vld [vmem:[#allocation5 + $0x128] sm:$0xff]
        %v231 = vld [vmem:[#allocation5 + $0x130] sm:$0xff]
        %v232 = vld [vmem:[#allocation5 + $0x138] sm:$0xff]
        %v233 = vld [vmem:[#allocation5 + $0x140] sm:$0xff]
        %v234 = vld [vmem:[#allocation5 + $0x148] sm:$0xff]
        %v235 = vld [vmem:[#allocation5 + $0x150] sm:$0xff]
        %v236 = vld [vmem:[#allocation5 + $0x158] sm:$0xff]
        %v237 = vld [vmem:[#allocation5 + $0x160] sm:$0xff]
        %v238 = vld [vmem:[#allocation5 + $0x168] sm:$0xff]
        %v239 = vld [vmem:[#allocation5 + $0x170] sm:$0xff]
        %v240 = vld [vmem:[#allocation5 + $0x178] sm:$0xff]
        %241 = vmatprep.subr.mxu0 %v194
        %242 = vmatpush1.msra.mxu0 %v193
        %243 = vmatprep.subr.mxu0 %v197
        %244 = vmatpush1.msra.mxu0 %v196
        %245 = vmatprep.subr.mxu0 %v200
        %246 = vmatpush1.msra.mxu0 %v199
        %247 = vmatprep.subr.mxu0 %v203
        %248 = vmatpush1.msra.mxu0 %v202
        %249 = vmatprep.subr.mxu0 %v206
        %250 = vmatpush1.msra.mxu0 %v205
        %251 = vmatprep.subr.mxu0 %v209
        %252 = vmatpush1.msra.mxu0 %v208
        %253 = vmatprep.subr.mxu0 %v212
        %254 = vmatpush1.msra.mxu0 %v211
        %255 = vmatprep.subr.mxu0 %v215
        %256 = vmatpush1.msra.mxu0 %v214
        %257 = vmatprep.subr.mxu0 %v218
        %258 = vmatpush1.msra.mxu0 %v217
        %259 = vmatprep.subr.mxu0 %v221
        %260 = vmatpush1.msra.mxu0 %v220
        %261 = vmatprep.subr.mxu0 %v224
        %262 = vmatpush1.msra.mxu0 %v223
        %263 = vmatprep.subr.mxu0 %v227
        %264 = vmatpush1.msra.mxu0 %v226
        %265 = vmatprep.subr.mxu0 %v230
        %266 = vmatpush1.msra.mxu0 %v229
        %267 = vmatprep.subr.mxu0 %v233
        %268 = vmatpush1.msra.mxu0 %v232
        %269 = vmatprep.subr.mxu0 %v236
        %270 = vmatpush1.msra.mxu0 %v235
        %271 = vmatprep.subr.mxu0 %v239
        %272 = vmatpush1.msra.mxu0 %v238
        %273 = vmatprep.subr.mxu0 0.0
        %274 = vmatpush1.msra.mxu0 0.0
        %275 = vmatprep.subr.mxu0 0.0
        %276 = vmatpush1.msra.mxu0 0.0
        %277 = vmatprep.subr.mxu0 0.0
        %278 = vmatpush1.msra.mxu0 0.0
        %279 = vmatprep.subr.mxu0 0.0
        %280 = vmatpush1.msra.mxu0 0.0
        %281 = vmatprep.subr.mxu0 0.0
        %282 = vmatpush1.msra.mxu0 0.0
        %283 = vmatprep.subr.mxu0 0.0
        %284 = vmatpush1.msra.mxu0 0.0
        %285 = vmatprep.subr.mxu0 0.0
        %286 = vmatpush1.msra.mxu0 0.0
        %287 = vmatprep.subr.mxu0 0.0
        %288 = vmatpush1.msra.mxu0 0.0
        %289 = vmatprep.subr.mxu0 0.0
        %290 = vmatpush1.msra.mxu0 0.0
        %291 = vmatprep.subr.mxu0 0.0
        %292 = vmatpush1.msra.mxu0 0.0
        %293 = vmatprep.subr.mxu0 0.0
        %294 = vmatpush1.msra.mxu0 0.0
        %295 = vmatprep.subr.mxu0 0.0
        %296 = vmatpush1.msra.mxu0 0.0
        %297 = vmatprep.subr.mxu0 0.0
        %298 = vmatpush1.msra.mxu0 0.0
        %299 = vmatprep.subr.mxu0 0.0
        %300 = vmatpush1.msra.mxu0 0.0
        %301 = vmatprep.subr.mxu0 0.0
        %302 = vmatpush1.msra.mxu0 0.0
        %303 = vmatprep.subr.mxu0 0.0
        %304 = vmatpush1.msra.mxu0 0.0
        %305 = vmatprep.mubr.f32.mxu0 0.0
        %306 = vmatmul.mubr.f32.gmra.mrb[0].mxu0 %v177
        %v307 = vpop.f32.mrb[0].mxu0
        %v308 = vadd.f32 0.0, %v307
        %v309 = vpop.f32.mrb[0].mxu0
        %v310 = vadd.f32 0.0, %v309
        %311 = vmatprep.mubr.f32.mxu0 0.0
        %312 = vmatmul.mubr.f32.gmra.mrb[0].mxu0 %v178
        %v313 = vpop.f32.mrb[0].mxu0
        %v314 = vadd.f32 0.0, %v313
        %v315 = vpop.f32.mrb[0].mxu0
        %v316 = vadd.f32 0.0, %v315
        %317 = vmatprep.mubr.f32.mxu0 0.0
        %318 = vmatmul.mubr.f32.gmra.mrb[0].mxu0 %v179
        %v319 = vpop.f32.mrb[0].mxu0
        %v320 = vadd.f32 0.0, %v319
        %v321 = vpop.f32.mrb[0].mxu0
        %v322 = vadd.f32 0.0, %v321
        %323 = vmatprep.mubr.f32.mxu0 0.0
        %324 = vmatmul.mubr.f32.gmra.mrb[0].mxu0 %v180
        %v325 = vpop.f32.mrb[0].mxu0
        %v326 = vadd.f32 0.0, %v325
        %v327 = vpop.f32.mrb[0].mxu0
        %v328 = vadd.f32 0.0, %v327
        %329 = vmatprep.mubr.f32.mxu0 0.0
        %330 = vmatmul.mubr.f32.gmra.mrb[0].mxu0 %v181
        %v331 = vpop.f32.mrb[0].mxu0
        %v332 = vadd.f32 0.0, %v331
        %v333 = vpop.f32.mrb[0].mxu0
        %v334 = vadd.f32 0.0, %v333
        %335 = vmatprep.mubr.f32.mxu0 0.0
        %336 = vmatmul.mubr.f32.gmra.mrb[0].mxu0 %v182
        %v337 = vpop.f32.mrb[0].mxu0
        %v338 = vadd.f32 0.0, %v337
        %v339 = vpop.f32.mrb[0].mxu0
        %v340 = vadd.f32 0.0, %v339
        %341 = vmatprep.mubr.f32.mxu0 0.0
        %342 = vmatmul.mubr.f32.gmra.mrb[0].mxu0 %v183
        %v343 = vpop.f32.mrb[0].mxu0
        %v344 = vadd.f32 0.0, %v343
        %v345 = vpop.f32.mrb[0].mxu0
        %v346 = vadd.f32 0.0, %v345
        %347 = vmatprep.mubr.f32.mxu0 0.0
        %348 = vmatmul.mubr.f32.gmra.mrb[0].mxu0 %v184
        %v349 = vpop.f32.mrb[0].mxu0
        %v350 = vadd.f32 0.0, %v349
        %v351 = vpop.f32.mrb[0].mxu0
        %v352 = vadd.f32 0.0, %v351
        %353 = vmatprep.mubr.f32.mxu0 0.0
        %354 = vmatmul.mubr.f32.gmra.mrb[0].mxu0 %v185
        %v355 = vpop.f32.mrb[0].mxu0
        %v356 = vadd.f32 0.0, %v355
        %v357 = vpop.f32.mrb[0].mxu0
        %v358 = vadd.f32 0.0, %v357
        %359 = vmatprep.mubr.f32.mxu0 0.0
        %360 = vmatmul.mubr.f32.gmra.mrb[0].mxu0 %v186
        %v361 = vpop.f32.mrb[0].mxu0
        %v362 = vadd.f32 0.0, %v361
        %v363 = vpop.f32.mrb[0].mxu0
        %v364 = vadd.f32 0.0, %v363
        %365 = vmatprep.mubr.f32.mxu0 0.0
        %366 = vmatmul.mubr.f32.gmra.mrb[0].mxu0 %v187
        %v367 = vpop.f32.mrb[0].mxu0
        %v368 = vadd.f32 0.0, %v367
        %v369 = vpop.f32.mrb[0].mxu0
        %v370 = vadd.f32 0.0, %v369
        %371 = vmatprep.mubr.f32.mxu0 0.0
        %372 = vmatmul.mubr.f32.gmra.mrb[0].mxu0 %v188
        %v373 = vpop.f32.mrb[0].mxu0
        %v374 = vadd.f32 0.0, %v373
        %v375 = vpop.f32.mrb[0].mxu0
        %v376 = vadd.f32 0.0, %v375
        %377 = vmatprep.mubr.f32.mxu0 0.0
        %378 = vmatmul.mubr.f32.gmra.mrb[0].mxu0 %v189
        %v379 = vpop.f32.mrb[0].mxu0
        %v380 = vadd.f32 0.0, %v379
        %v381 = vpop.f32.mrb[0].mxu0
        %v382 = vadd.f32 0.0, %v381
        %383 = vmatprep.mubr.f32.mxu0 0.0
        %384 = vmatmul.mubr.f32.gmra.mrb[0].mxu0 %v190
        %v385 = vpop.f32.mrb[0].mxu0
        %v386 = vadd.f32 0.0, %v385
        %v387 = vpop.f32.mrb[0].mxu0
        %v388 = vadd.f32 0.0, %v387
        %389 = vmatprep.mubr.f32.mxu0 0.0
        %390 = vmatmul.mubr.f32.gmra.mrb[0].mxu0 %v191
        %v391 = vpop.f32.mrb[0].mxu0
        %v392 = vadd.f32 0.0, %v391
        %v393 = vpop.f32.mrb[0].mxu0
        %v394 = vadd.f32 0.0, %v393
        %395 = vmatprep.mubr.f32.mxu0 0.0
        %396 = vmatmul.mubr.f32.gmra.mrb[0].mxu0 %v192
        %v397 = vpop.f32.mrb[0].mxu0
        %v398 = vadd.f32 0.0, %v397
        %v399 = vpop.f32.mrb[0].mxu0
        %v400 = vadd.f32 0.0, %v399
        %401 = vdwg.mxu0
        %402 = vmatprep.subr.mxu0 0.0
        %403 = vmatpush1.msra.mxu0 %v195
        %404 = vmatprep.subr.mxu0 0.0
        %405 = vmatpush1.msra.mxu0 %v198
        %406 = vmatprep.subr.mxu0 0.0
        %407 = vmatpush1.msra.mxu0 %v201
        %408 = vmatprep.subr.mxu0 0.0
        %409 = vmatpush1.msra.mxu0 %v204
        %410 = vmatprep.subr.mxu0 0.0
        %411 = vmatpush1.msra.mxu0 %v207
        %412 = vmatprep.subr.mxu0 0.0
        %413 = vmatpush1.msra.mxu0 %v210
        %414 = vmatprep.subr.mxu0 0.0
        %415 = vmatpush1.msra.mxu0 %v213
        %416 = vmatprep.subr.mxu0 0.0
        %417 = vmatpush1.msra.mxu0 %v216
        %418 = vmatprep.subr.mxu0 0.0
        %419 = vmatpush1.msra.mxu0 %v219
        %420 = vmatprep.subr.mxu0 0.0
        %421 = vmatpush1.msra.mxu0 %v222
        %422 = vmatprep.subr.mxu0 0.0
        %423 = vmatpush1.msra.mxu0 %v225
        %424 = vmatprep.subr.mxu0 0.0
        %425 = vmatpush1.msra.mxu0 %v228
        %426 = vmatprep.subr.mxu0 0.0
        %427 = vmatpush1.msra.mxu0 %v231
        %428 = vmatprep.subr.mxu0 0.0
        %429 = vmatpush1.msra.mxu0 %v234
        %430 = vmatprep.subr.mxu0 0.0
        %431 = vmatpush1.msra.mxu0 %v237
        %432 = vmatprep.subr.mxu0 0.0
        %433 = vmatpush1.msra.mxu0 %v240
        %434 = vmatprep.subr.mxu0 0.0
        %435 = vmatpush1.msra.mxu0 0.0
        %436 = vmatprep.subr.mxu0 0.0
        %437 = vmatpush1.msra.mxu0 0.0
        %438 = vmatprep.subr.mxu0 0.0
        %439 = vmatpush1.msra.mxu0 0.0
        %440 = vmatprep.subr.mxu0 0.0
        %441 = vmatpush1.msra.mxu0 0.0
        %442 = vmatprep.subr.mxu0 0.0
        %443 = vmatpush1.msra.mxu0 0.0
        %444 = vmatprep.subr.mxu0 0.0
        %445 = vmatpush1.msra.mxu0 0.0
        %446 = vmatprep.subr.mxu0 0.0
        %447 = vmatpush1.msra.mxu0 0.0
        %448 = vmatprep.subr.mxu0 0.0
        %449 = vmatpush1.msra.mxu0 0.0
        %450 = vmatprep.subr.mxu0 0.0
        %451 = vmatpush1.msra.mxu0 0.0
        %452 = vmatprep.subr.mxu0 0.0
        %453 = vmatpush1.msra.mxu0 0.0
        %454 = vmatprep.subr.mxu0 0.0
        %455 = vmatpush1.msra.mxu0 0.0
        %456 = vmatprep.subr.mxu0 0.0
        %457 = vmatpush1.msra.mxu0 0.0
        %458 = vmatprep.subr.mxu0 0.0
        %459 = vmatpush1.msra.mxu0 0.0
        %460 = vmatprep.subr.mxu0 0.0
        %461 = vmatpush1.msra.mxu0 0.0
        %462 = vmatprep.subr.mxu0 0.0
        %463 = vmatpush1.msra.mxu0 0.0
        %464 = vmatprep.subr.mxu0 0.0
        %465 = vmatpush1.msra.mxu0 0.0
        %466 = vmatprep.mubr.f32.mxu0 0.0
        %467 = vmatmul.mubr.f32.gmra.mrb[0].mxu0 %v177
        %v468 = vpop.f32.mrb[0].mxu0
        %v469 = vadd.f32 0.0, %v468
        %v470 = vpop.f32.mrb[0].mxu0
        %471 = vmatprep.mubr.f32.mxu0 0.0
        %472 = vmatmul.mubr.f32.gmra.mrb[0].mxu0 %v178
        %v473 = vpop.f32.mrb[0].mxu0
        %v474 = vadd.f32 0.0, %v473
        %v475 = vpop.f32.mrb[0].mxu0
        %476 = vmatprep.mubr.f32.mxu0 0.0
        %477 = vmatmul.mubr.f32.gmra.mrb[0].mxu0 %v179
        %v478 = vpop.f32.mrb[0].mxu0
        %v479 = vadd.f32 0.0, %v478
        %v480 = vpop.f32.mrb[0].mxu0
        %481 = vmatprep.mubr.f32.mxu0 0.0
        %482 = vmatmul.mubr.f32.gmra.mrb[0].mxu0 %v180
        %v483 = vpop.f32.mrb[0].mxu0
        %v484 = vadd.f32 0.0, %v483
        %v485 = vpop.f32.mrb[0].mxu0
        %486 = vmatprep.mubr.f32.mxu0 0.0
        %487 = vmatmul.mubr.f32.gmra.mrb[0].mxu0 %v181
        %v488 = vpop.f32.mrb[0].mxu0
        %v489 = vadd.f32 0.0, %v488
        %v490 = vpop.f32.mrb[0].mxu0
        %491 = vmatprep.mubr.f32.mxu0 0.0
        %492 = vmatmul.mubr.f32.gmra.mrb[0].mxu0 %v182
        %v493 = vpop.f32.mrb[0].mxu0
        %v494 = vadd.f32 0.0, %v493
        %v495 = vpop.f32.mrb[0].mxu0
        %496 = vmatprep.mubr.f32.mxu0 0.0
        %497 = vmatmul.mubr.f32.gmra.mrb[0].mxu0 %v183
        %v498 = vpop.f32.mrb[0].mxu0
        %v499 = vadd.f32 0.0, %v498
        %v500 = vpop.f32.mrb[0].mxu0
        %501 = vmatprep.mubr.f32.mxu0 0.0
        %502 = vmatmul.mubr.f32.gmra.mrb[0].mxu0 %v184
        %v503 = vpop.f32.mrb[0].mxu0
        %v504 = vadd.f32 0.0, %v503
        %v505 = vpop.f32.mrb[0].mxu0
        %506 = vmatprep.mubr.f32.mxu0 0.0
        %507 = vmatmul.mubr.f32.gmra.mrb[0].mxu0 %v185
        %v508 = vpop.f32.mrb[0].mxu0
        %v509 = vadd.f32 0.0, %v508
        %v510 = vpop.f32.mrb[0].mxu0
        %511 = vmatprep.mubr.f32.mxu0 0.0
        %512 = vmatmul.mubr.f32.gmra.mrb[0].mxu0 %v186
        %v513 = vpop.f32.mrb[0].mxu0
        %v514 = vadd.f32 0.0, %v513
        %v515 = vpop.f32.mrb[0].mxu0
        %516 = vmatprep.mubr.f32.mxu0 0.0
        %517 = vmatmul.mubr.f32.gmra.mrb[0].mxu0 %v187
        %v518 = vpop.f32.mrb[0].mxu0
        %v519 = vadd.f32 0.0, %v518
        %v520 = vpop.f32.mrb[0].mxu0
        %521 = vmatprep.mubr.f32.mxu0 0.0
        %522 = vmatmul.mubr.f32.gmra.mrb[0].mxu0 %v188
        %v523 = vpop.f32.mrb[0].mxu0
        %v524 = vadd.f32 0.0, %v523
        %v525 = vpop.f32.mrb[0].mxu0
        %526 = vmatprep.mubr.f32.mxu0 0.0
        %527 = vmatmul.mubr.f32.gmra.mrb[0].mxu0 %v189
        %v528 = vpop.f32.mrb[0].mxu0
        %v529 = vadd.f32 0.0, %v528
        %v530 = vpop.f32.mrb[0].mxu0
        %531 = vmatprep.mubr.f32.mxu0 0.0
        %532 = vmatmul.mubr.f32.gmra.mrb[0].mxu0 %v190
        %v533 = vpop.f32.mrb[0].mxu0
        %v534 = vadd.f32 0.0, %v533
        %v535 = vpop.f32.mrb[0].mxu0
        %536 = vmatprep.mubr.f32.mxu0 0.0
        %537 = vmatmul.mubr.f32.gmra.mrb[0].mxu0 %v191
        %v538 = vpop.f32.mrb[0].mxu0
        %v539 = vadd.f32 0.0, %v538
        %v540 = vpop.f32.mrb[0].mxu0
        %541 = vmatprep.mubr.f32.mxu0 0.0
        %542 = vmatmul.mubr.f32.gmra.mrb[0].mxu0 %v192
        %v543 = vpop.f32.mrb[0].mxu0
        %v544 = vadd.f32 0.0, %v543
        %v545 = vpop.f32.mrb[0].mxu0
        %546 = vdwg.mxu0
        %v547 = vmul.f32 %v308, 0.17677669
        %v548 = vmul.f32 %v314, 0.17677669
        %v549 = vmul.f32 %v320, 0.17677669
        %v550 = vmul.f32 %v326, 0.17677669
        %v551 = vmul.f32 %v332, 0.17677669
        %v552 = vmul.f32 %v338, 0.17677669
        %v553 = vmul.f32 %v344, 0.17677669
        %v554 = vmul.f32 %v350, 0.17677669
        %v555 = vmul.f32 %v356, 0.17677669
        %v556 = vmul.f32 %v362, 0.17677669
        %v557 = vmul.f32 %v368, 0.17677669
        %v558 = vmul.f32 %v374, 0.17677669
        %v559 = vmul.f32 %v380, 0.17677669
        %v560 = vmul.f32 %v386, 0.17677669
        %v561 = vmul.f32 %v392, 0.17677669
        %v562 = vmul.f32 %v398, 0.17677669
        %563 = vmatprep.subr.mxu0 0.0
        %564 = vmatpush1.xpose.msra.mxu0 %v310
        %565 = vmatprep.subr.mxu0 0.0
        %566 = vmatpush1.xpose.msra.mxu0 %v316
        %567 = vmatprep.subr.mxu0 0.0
        %568 = vmatpush1.xpose.msra.mxu0 %v322
        %569 = vmatprep.subr.mxu0 0.0
        %570 = vmatpush1.xpose.msra.mxu0 %v328
        %571 = vmatprep.subr.mxu0 0.0
        %572 = vmatpush1.xpose.msra.mxu0 %v334
        %573 = vmatprep.subr.mxu0 0.0
        %574 = vmatpush1.xpose.msra.mxu0 %v340
        %575 = vmatprep.subr.mxu0 0.0
        %576 = vmatpush1.xpose.msra.mxu0 %v346
        %577 = vmatprep.subr.mxu0 0.0
        %578 = vmatpush1.xpose.msra.mxu0 %v352
        %579 = vmatprep.subr.mxu0 0.0
        %580 = vmatpush1.xpose.msra.mxu0 %v358
        %581 = vmatprep.subr.mxu0 0.0
        %582 = vmatpush1.xpose.msra.mxu0 %v364
        %583 = vmatprep.subr.mxu0 0.0
        %584 = vmatpush1.xpose.msra.mxu0 %v370
        %585 = vmatprep.subr.mxu0 0.0
        %586 = vmatpush1.xpose.msra.mxu0 %v376
        %587 = vmatprep.subr.mxu0 0.0
        %588 = vmatpush1.xpose.msra.mxu0 %v382
        %589 = vmatprep.subr.mxu0 0.0
        %590 = vmatpush1.xpose.msra.mxu0 %v388
        %591 = vmatprep.subr.mxu0 0.0
        %592 = vmatpush1.xpose.msra.mxu0 %v394
        %593 = vmatprep.subr.mxu0 0.0
        %594 = vmatpush1.xpose.msra.mxu0 %v400
        %595 = vmatprep.subr.mxu0 0.0
        %596 = vmatpush1.xpose.msra.mxu0 0.0
        %597 = vmatprep.subr.mxu0 0.0
        %598 = vmatpush1.xpose.msra.mxu0 0.0
        %599 = vmatprep.subr.mxu0 0.0
        %600 = vmatpush1.xpose.msra.mxu0 0.0
        %601 = vmatprep.subr.mxu0 0.0
        %602 = vmatpush1.xpose.msra.mxu0 0.0
        %603 = vmatprep.subr.mxu0 0.0
        %604 = vmatpush1.xpose.msra.mxu0 0.0
        %605 = vmatprep.subr.mxu0 0.0
        %606 = vmatpush1.xpose.msra.mxu0 0.0
        %607 = vmatprep.subr.mxu0 0.0
        %608 = vmatpush1.xpose.msra.mxu0 0.0
        %609 = vmatprep.subr.mxu0 0.0
        %610 = vmatpush1.xpose.msra.mxu0 0.0
        %611 = vmatprep.subr.mxu0 0.0
        %612 = vmatpush1.xpose.msra.mxu0 0.0
        %613 = vmatprep.subr.mxu0 0.0
        %614 = vmatpush1.xpose.msra.mxu0 0.0
        %615 = vmatprep.subr.mxu0 0.0
        %616 = vmatpush1.xpose.msra.mxu0 0.0
        %617 = vmatprep.subr.mxu0 0.0
        %618 = vmatpush1.xpose.msra.mxu0 0.0
        %619 = vmatprep.subr.mxu0 0.0
        %620 = vmatpush1.xpose.msra.mxu0 0.0
        %621 = vmatprep.subr.mxu0 0.0
        %622 = vmatpush1.xpose.msra.mxu0 0.0
        %623 = vmatprep.subr.mxu0 0.0
        %624 = vmatpush1.xpose.msra.mxu0 0.0
        %625 = vmatprep.subr.mxu0 0.0
        %626 = vmatpush1.xpose.msra.mxu0 0.0
        %627 = vmatprep.mubr.f32.mxu0 0.0
        %628 = vmatmul.mubr.f32.gmra.mrb[0].mxu0 %v547
        %v629 = vpop.f32.mrb[0].mxu0
        %v630 = vadd.f32 0.0, %v629
        %v631 = vpop.f32.mrb[0].mxu0
        %632 = vmatprep.mubr.f32.mxu0 0.0
        %633 = vmatmul.mubr.f32.gmra.mrb[0].mxu0 %v548
        %v634 = vpop.f32.mrb[0].mxu0
        %v635 = vadd.f32 0.0, %v634
        %v636 = vpop.f32.mrb[0].mxu0
        %637 = vmatprep.mubr.f32.mxu0 0.0
        %638 = vmatmul.mubr.f32.gmra.mrb[0].mxu0 %v549
        %v639 = vpop.f32.mrb[0].mxu0
        %v640 = vadd.f32 0.0, %v639
        %v641 = vpop.f32.mrb[0].mxu0
        %642 = vmatprep.mubr.f32.mxu0 0.0
        %643 = vmatmul.mubr.f32.gmra.mrb[0].mxu0 %v550
        %v644 = vpop.f32.mrb[0].mxu0
        %v645 = vadd.f32 0.0, %v644
        %v646 = vpop.f32.mrb[0].mxu0
        %647 = vmatprep.mubr.f32.mxu0 0.0
        %648 = vmatmul.mubr.f32.gmra.mrb[0].mxu0 %v551
        %v649 = vpop.f32.mrb[0].mxu0
        %v650 = vadd.f32 0.0, %v649
        %v651 = vpop.f32.mrb[0].mxu0
        %652 = vmatprep.mubr.f32.mxu0 0.0
        %653 = vmatmul.mubr.f32.gmra.mrb[0].mxu0 %v552
        %v654 = vpop.f32.mrb[0].mxu0
        %v655 = vadd.f32 0.0, %v654
        %v656 = vpop.f32.mrb[0].mxu0
        %657 = vmatprep.mubr.f32.mxu0 0.0
        %658 = vmatmul.mubr.f32.gmra.mrb[0].mxu0 %v553
        %v659 = vpop.f32.mrb[0].mxu0
        %v660 = vadd.f32 0.0, %v659
        %v661 = vpop.f32.mrb[0].mxu0
        %662 = vmatprep.mubr.f32.mxu0 0.0
        %663 = vmatmul.mubr.f32.gmra.mrb[0].mxu0 %v554
        %v664 = vpop.f32.mrb[0].mxu0
        %v665 = vadd.f32 0.0, %v664
        %v666 = vpop.f32.mrb[0].mxu0
        %667 = vmatprep.mubr.f32.mxu0 0.0
        %668 = vmatmul.mubr.f32.gmra.mrb[0].mxu0 %v555
        %v669 = vpop.f32.mrb[0].mxu0
        %v670 = vadd.f32 0.0, %v669
        %v671 = vpop.f32.mrb[0].mxu0
        %672 = vmatprep.mubr.f32.mxu0 0.0
        %673 = vmatmul.mubr.f32.gmra.mrb[0].mxu0 %v556
        %v674 = vpop.f32.mrb[0].mxu0
        %v675 = vadd.f32 0.0, %v674
        %v676 = vpop.f32.mrb[0].mxu0
        %677 = vmatprep.mubr.f32.mxu0 0.0
        %678 = vmatmul.mubr.f32.gmra.mrb[0].mxu0 %v557
        %v679 = vpop.f32.mrb[0].mxu0
        %v680 = vadd.f32 0.0, %v679
        %v681 = vpop.f32.mrb[0].mxu0
        %682 = vmatprep.mubr.f32.mxu0 0.0
        %683 = vmatmul.mubr.f32.gmra.mrb[0].mxu0 %v558
        %v684 = vpop.f32.mrb[0].mxu0
        %v685 = vadd.f32 0.0, %v684
        %v686 = vpop.f32.mrb[0].mxu0
        %687 = vmatprep.mubr.f32.mxu0 0.0
        %688 = vmatmul.mubr.f32.gmra.mrb[0].mxu0 %v559
        %v689 = vpop.f32.mrb[0].mxu0
        %v690 = vadd.f32 0.0, %v689
        %v691 = vpop.f32.mrb[0].mxu0
        %692 = vmatprep.mubr.f32.mxu0 0.0
        %693 = vmatmul.mubr.f32.gmra.mrb[0].mxu0 %v560
        %v694 = vpop.f32.mrb[0].mxu0
        %v695 = vadd.f32 0.0, %v694
        %v696 = vpop.f32.mrb[0].mxu0
        %697 = vmatprep.mubr.f32.mxu0 0.0
        %698 = vmatmul.mubr.f32.gmra.mrb[0].mxu0 %v561
        %v699 = vpop.f32.mrb[0].mxu0
        %v700 = vadd.f32 0.0, %v699
        %v701 = vpop.f32.mrb[0].mxu0
        %702 = vmatprep.mubr.f32.mxu0 0.0
        %703 = vmatmul.mubr.f32.gmra.mrb[0].mxu0 %v562
        %v704 = vpop.f32.mrb[0].mxu0
        %v705 = vadd.f32 0.0, %v704
        %v706 = vpop.f32.mrb[0].mxu0
        %707 = vdwg.mxu0
        %v708 = vlaneseq
        %v709 = vand.u32 %v708, 127
        %vm710 = vcmp.lt.s32.totalorder %v709, 8
        %v711 = vsel %vm710, %v630, -1e+30
        %v712 = vsel %vm710, %v635, -1e+30
        %v713 = vsel %vm710, %v640, -1e+30
        %v714 = vsel %vm710, %v645, -1e+30
        %v715 = vsel %vm710, %v650, -1e+30
        %v716 = vsel %vm710, %v655, -1e+30
        %v717 = vsel %vm710, %v660, -1e+30
        %v718 = vsel %vm710, %v665, -1e+30
        %v719 = vsel %vm710, %v670, -1e+30
        %v720 = vsel %vm710, %v675, -1e+30
        %v721 = vsel %vm710, %v680, -1e+30
        %v722 = vsel %vm710, %v685, -1e+30
        %v723 = vsel %vm710, %v690, -1e+30
        %v724 = vsel %vm710, %v695, -1e+30
        %v725 = vsel %vm710, %v700, -1e+30
        %v726 = vsel %vm710, %v705, -1e+30
        %727 = vmax.xlane.f32.xlu0 %v711
        %v728 = vpop.xlane.xlu0 %727
        %729 = vmax.xlane.f32.xlu0 %v712
        %v730 = vpop.xlane.xlu0 %729
        %731 = vmax.xlane.f32.xlu0 %v713
        %v732 = vpop.xlane.xlu0 %731
        %733 = vmax.xlane.f32.xlu0 %v714
        %v734 = vpop.xlane.xlu0 %733
        %735 = vmax.xlane.f32.xlu0 %v715
        %v736 = vpop.xlane.xlu0 %735
        %737 = vmax.xlane.f32.xlu0 %v716
        %v738 = vpop.xlane.xlu0 %737
        %739 = vmax.xlane.f32.xlu0 %v717
        %v740 = vpop.xlane.xlu0 %739
        %741 = vmax.xlane.f32.xlu0 %v718
        %v742 = vpop.xlane.xlu0 %741
        %743 = vmax.xlane.f32.xlu0 %v719
        %v744 = vpop.xlane.xlu0 %743
        %745 = vmax.xlane.f32.xlu0 %v720
        %v746 = vpop.xlane.xlu0 %745
        %747 = vmax.xlane.f32.xlu0 %v721
        %v748 = vpop.xlane.xlu0 %747
        %749 = vmax.xlane.f32.xlu0 %v722
        %v750 = vpop.xlane.xlu0 %749
        %751 = vmax.xlane.f32.xlu0 %v723
        %v752 = vpop.xlane.xlu0 %751
        %753 = vmax.xlane.f32.xlu0 %v724
        %v754 = vpop.xlane.xlu0 %753
        %755 = vmax.xlane.f32.xlu0 %v725
        %v756 = vpop.xlane.xlu0 %755
        %757 = vmax.xlane.f32.xlu0 %v726
        %v758 = vpop.xlane.xlu0 %757
        %v759 = vsub.f32 %v711, %v728
        %v760 = vsub.f32 %v712, %v730
        %v761 = vsub.f32 %v713, %v732
        %v762 = vsub.f32 %v714, %v734
        %v763 = vsub.f32 %v715, %v736
        %v764 = vsub.f32 %v716, %v738
        %v765 = vsub.f32 %v717, %v740
        %v766 = vsub.f32 %v718, %v742
        %v767 = vsub.f32 %v719, %v744
        %v768 = vsub.f32 %v720, %v746
        %v769 = vsub.f32 %v721, %v748
        %v770 = vsub.f32 %v722, %v750
        %v771 = vsub.f32 %v723, %v752
        %v772 = vsub.f32 %v724, %v754
        %v773 = vsub.f32 %v725, %v756
        %v774 = vsub.f32 %v726, %v758
        %v775 = vmul.f32 %v759, 1.442695
        %v776 = vpow.pop %v775
        %v777 = vmul.f32 %v760, 1.442695
        %v778 = vpow.pop %v777
        %v779 = vmul.f32 %v761, 1.442695
        %v780 = vpow.pop %v779
        %v781 = vmul.f32 %v762, 1.442695
        %v782 = vpow.pop %v781
        %v783 = vmul.f32 %v763, 1.442695
        %v784 = vpow.pop %v783
        %v785 = vmul.f32 %v764, 1.442695
        %v786 = vpow.pop %v785
        %v787 = vmul.f32 %v765, 1.442695
        %v788 = vpow.pop %v787
        %v789 = vmul.f32 %v766, 1.442695
        %v790 = vpow.pop %v789
        %v791 = vmul.f32 %v767, 1.442695
        %v792 = vpow.pop %v791
        %v793 = vmul.f32 %v768, 1.442695
        %v794 = vpow.pop %v793
        %v795 = vmul.f32 %v769, 1.442695
        %v796 = vpow.pop %v795
        %v797 = vmul.f32 %v770, 1.442695
        %v798 = vpow.pop %v797
        %v799 = vmul.f32 %v771, 1.442695
        %v800 = vpow.pop %v799
        %v801 = vmul.f32 %v772, 1.442695
        %v802 = vpow.pop %v801
        %v803 = vmul.f32 %v773, 1.442695
        %v804 = vpow.pop %v803
        %v805 = vmul.f32 %v774, 1.442695
        %v806 = vpow.pop %v805
        %807 = vadd.xlane.f32.xlu0 %v776
        %v808 = vpop.xlane.xlu0 %807
        %809 = vadd.xlane.f32.xlu0 %v778
        %v810 = vpop.xlane.xlu0 %809
        %811 = vadd.xlane.f32.xlu0 %v780
        %v812 = vpop.xlane.xlu0 %811
        %813 = vadd.xlane.f32.xlu0 %v782
        %v814 = vpop.xlane.xlu0 %813
        %815 = vadd.xlane.f32.xlu0 %v784
        %v816 = vpop.xlane.xlu0 %815
        %817 = vadd.xlane.f32.xlu0 %v786
        %v818 = vpop.xlane.xlu0 %817
        %819 = vadd.xlane.f32.xlu0 %v788
        %v820 = vpop.xlane.xlu0 %819
        %821 = vadd.xlane.f32.xlu0 %v790
        %v822 = vpop.xlane.xlu0 %821
        %823 = vadd.xlane.f32.xlu0 %v792
        %v824 = vpop.xlane.xlu0 %823
        %825 = vadd.xlane.f32.xlu0 %v794
        %v826 = vpop.xlane.xlu0 %825
        %827 = vadd.xlane.f32.xlu0 %v796
        %v828 = vpop.xlane.xlu0 %827
        %829 = vadd.xlane.f32.xlu0 %v798
        %v830 = vpop.xlane.xlu0 %829
        %831 = vadd.xlane.f32.xlu0 %v800
        %v832 = vpop.xlane.xlu0 %831
        %833 = vadd.xlane.f32.xlu0 %v802
        %v834 = vpop.xlane.xlu0 %833
        %835 = vadd.xlane.f32.xlu0 %v804
        %v836 = vpop.xlane.xlu0 %835
        %837 = vadd.xlane.f32.xlu0 %v806
        %v838 = vpop.xlane.xlu0 %837
        %839 = vmatprep.subr.mxu0 0.0
        %840 = vmatpush1.msra.mxu0 %v469
        %841 = vmatprep.subr.mxu0 0.0
        %842 = vmatpush1.msra.mxu0 %v474
        %843 = vmatprep.subr.mxu0 0.0
        %844 = vmatpush1.msra.mxu0 %v479
        %845 = vmatprep.subr.mxu0 0.0
        %846 = vmatpush1.msra.mxu0 %v484
        %847 = vmatprep.subr.mxu0 0.0
        %848 = vmatpush1.msra.mxu0 %v489
        %849 = vmatprep.subr.mxu0 0.0
        %850 = vmatpush1.msra.mxu0 %v494
        %851 = vmatprep.subr.mxu0 0.0
        %852 = vmatpush1.msra.mxu0 %v499
        %853 = vmatprep.subr.mxu0 0.0
        %854 = vmatpush1.msra.mxu0 %v504
        %855 = vmatprep.subr.mxu0 0.0
        %856 = vmatpush1.msra.mxu0 %v509
        %857 = vmatprep.subr.mxu0 0.0
        %858 = vmatpush1.msra.mxu0 %v514
        %859 = vmatprep.subr.mxu0 0.0
        %860 = vmatpush1.msra.mxu0 %v519
        %861 = vmatprep.subr.mxu0 0.0
        %862 = vmatpush1.msra.mxu0 %v524
        %863 = vmatprep.subr.mxu0 0.0
        %864 = vmatpush1.msra.mxu0 %v529
        %865 = vmatprep.subr.mxu0 0.0
        %866 = vmatpush1.msra.mxu0 %v534
        %867 = vmatprep.subr.mxu0 0.0
        %868 = vmatpush1.msra.mxu0 %v539
        %869 = vmatprep.subr.mxu0 0.0
        %870 = vmatpush1.msra.mxu0 %v544
        %871 = vmatprep.subr.mxu0 0.0
        %872 = vmatpush1.msra.mxu0 0.0
        %873 = vmatprep.subr.mxu0 0.0
        %874 = vmatpush1.msra.mxu0 0.0
        %875 = vmatprep.subr.mxu0 0.0
        %876 = vmatpush1.msra.mxu0 0.0
        %877 = vmatprep.subr.mxu0 0.0
        %878 = vmatpush1.msra.mxu0 0.0
        %879 = vmatprep.subr.mxu0 0.0
        %880 = vmatpush1.msra.mxu0 0.0
        %881 = vmatprep.subr.mxu0 0.0
        %882 = vmatpush1.msra.mxu0 0.0
        %883 = vmatprep.subr.mxu0 0.0
        %884 = vmatpush1.msra.mxu0 0.0
        %885 = vmatprep.subr.mxu0 0.0
        %886 = vmatpush1.msra.mxu0 0.0
        %887 = vmatprep.subr.mxu0 0.0
        %888 = vmatpush1.msra.mxu0 0.0
        %889 = vmatprep.subr.mxu0 0.0
        %890 = vmatpush1.msra.mxu0 0.0
        %891 = vmatprep.subr.mxu0 0.0
        %892 = vmatpush1.msra.mxu0 0.0
        %893 = vmatprep.subr.mxu0 0.0
        %894 = vmatpush1.msra.mxu0 0.0
        %895 = vmatprep.subr.mxu0 0.0
        %896 = vmatpush1.msra.mxu0 0.0
        %897 = vmatprep.subr.mxu0 0.0
        %898 = vmatpush1.msra.mxu0 0.0
        %899 = vmatprep.subr.mxu0 0.0
        %900 = vmatpush1.msra.mxu0 0.0
        %901 = vmatprep.subr.mxu0 0.0
        %902 = vmatpush1.msra.mxu0 0.0
        %903 = vmatprep.mubr.f32.mxu0 0.0
        %904 = vmatmul.mubr.f32.gmra.mrb[0].mxu0 %v776
        %v905 = vpop.f32.mrb[0].mxu0
        %v906 = vadd.f32 0.0, %v905
        %v907 = vpop.f32.mrb[0].mxu0
        %908 = vmatprep.mubr.f32.mxu0 0.0
        %909 = vmatmul.mubr.f32.gmra.mrb[0].mxu0 %v778
        %v910 = vpop.f32.mrb[0].mxu0
        %v911 = vadd.f32 0.0, %v910
        %v912 = vpop.f32.mrb[0].mxu0
        %913 = vmatprep.mubr.f32.mxu0 0.0
        %914 = vmatmul.mubr.f32.gmra.mrb[0].mxu0 %v780
        %v915 = vpop.f32.mrb[0].mxu0
        %v916 = vadd.f32 0.0, %v915
        %v917 = vpop.f32.mrb[0].mxu0
        %918 = vmatprep.mubr.f32.mxu0 0.0
        %919 = vmatmul.mubr.f32.gmra.mrb[0].mxu0 %v782
        %v920 = vpop.f32.mrb[0].mxu0
        %v921 = vadd.f32 0.0, %v920
        %v922 = vpop.f32.mrb[0].mxu0
        %923 = vmatprep.mubr.f32.mxu0 0.0
        %924 = vmatmul.mubr.f32.gmra.mrb[0].mxu0 %v784
        %v925 = vpop.f32.mrb[0].mxu0
        %v926 = vadd.f32 0.0, %v925
        %v927 = vpop.f32.mrb[0].mxu0
        %928 = vmatprep.mubr.f32.mxu0 0.0
        %929 = vmatmul.mubr.f32.gmra.mrb[0].mxu0 %v786
        %v930 = vpop.f32.mrb[0].mxu0
        %v931 = vadd.f32 0.0, %v930
        %v932 = vpop.f32.mrb[0].mxu0
        %933 = vmatprep.mubr.f32.mxu0 0.0
        %934 = vmatmul.mubr.f32.gmra.mrb[0].mxu0 %v788
        %v935 = vpop.f32.mrb[0].mxu0
        %v936 = vadd.f32 0.0, %v935
        %v937 = vpop.f32.mrb[0].mxu0
        %938 = vmatprep.mubr.f32.mxu0 0.0
        %939 = vmatmul.mubr.f32.gmra.mrb[0].mxu0 %v790
        %v940 = vpop.f32.mrb[0].mxu0
        %v941 = vadd.f32 0.0, %v940
        %v942 = vpop.f32.mrb[0].mxu0
        %943 = vmatprep.mubr.f32.mxu0 0.0
        %944 = vmatmul.mubr.f32.gmra.mrb[0].mxu0 %v792
        %v945 = vpop.f32.mrb[0].mxu0
        %v946 = vadd.f32 0.0, %v945
        %v947 = vpop.f32.mrb[0].mxu0
        %948 = vmatprep.mubr.f32.mxu0 0.0
        %949 = vmatmul.mubr.f32.gmra.mrb[0].mxu0 %v794
        %v950 = vpop.f32.mrb[0].mxu0
        %v951 = vadd.f32 0.0, %v950
        %v952 = vpop.f32.mrb[0].mxu0
        %953 = vmatprep.mubr.f32.mxu0 0.0
        %954 = vmatmul.mubr.f32.gmra.mrb[0].mxu0 %v796
        %v955 = vpop.f32.mrb[0].mxu0
        %v956 = vadd.f32 0.0, %v955
        %v957 = vpop.f32.mrb[0].mxu0
        %958 = vmatprep.mubr.f32.mxu0 0.0
        %959 = vmatmul.mubr.f32.gmra.mrb[0].mxu0 %v798
        %v960 = vpop.f32.mrb[0].mxu0
        %v961 = vadd.f32 0.0, %v960
        %v962 = vpop.f32.mrb[0].mxu0
        %963 = vmatprep.mubr.f32.mxu0 0.0
        %964 = vmatmul.mubr.f32.gmra.mrb[0].mxu0 %v800
        %v965 = vpop.f32.mrb[0].mxu0
        %v966 = vadd.f32 0.0, %v965
        %v967 = vpop.f32.mrb[0].mxu0
        %968 = vmatprep.mubr.f32.mxu0 0.0
        %969 = vmatmul.mubr.f32.gmra.mrb[0].mxu0 %v802
        %v970 = vpop.f32.mrb[0].mxu0
        %v971 = vadd.f32 0.0, %v970
        %v972 = vpop.f32.mrb[0].mxu0
        %973 = vmatprep.mubr.f32.mxu0 0.0
        %974 = vmatmul.mubr.f32.gmra.mrb[0].mxu0 %v804
        %v975 = vpop.f32.mrb[0].mxu0
        %v976 = vadd.f32 0.0, %v975
        %v977 = vpop.f32.mrb[0].mxu0
        %978 = vmatprep.mubr.f32.mxu0 0.0
        %979 = vmatmul.mubr.f32.gmra.mrb[0].mxu0 %v806
        %v980 = vpop.f32.mrb[0].mxu0
        %v981 = vadd.f32 0.0, %v980
        %v982 = vpop.f32.mrb[0].mxu0
        %983 = vdwg.mxu0
        %v984 = vrcp.pop %v808
        %v985 = vmul.f32 %v906, %v984
        %v986 = vrcp.pop %v810
        %v987 = vmul.f32 %v911, %v986
        %v988 = vrcp.pop %v812
        %v989 = vmul.f32 %v916, %v988
        %v990 = vrcp.pop %v814
        %v991 = vmul.f32 %v921, %v990
        %v992 = vrcp.pop %v816
        %v993 = vmul.f32 %v926, %v992
        %v994 = vrcp.pop %v818
        %v995 = vmul.f32 %v931, %v994
        %v996 = vrcp.pop %v820
        %v997 = vmul.f32 %v936, %v996
        %v998 = vrcp.pop %v822
        %v999 = vmul.f32 %v941, %v998
        %v1000 = vrcp.pop %v824
        %v1001 = vmul.f32 %v946, %v1000
        %v1002 = vrcp.pop %v826
        %v1003 = vmul.f32 %v951, %v1002
        %v1004 = vrcp.pop %v828
        %v1005 = vmul.f32 %v956, %v1004
        %v1006 = vrcp.pop %v830
        %v1007 = vmul.f32 %v961, %v1006
        %v1008 = vrcp.pop %v832
        %v1009 = vmul.f32 %v966, %v1008
        %v1010 = vrcp.pop %v834
        %v1011 = vmul.f32 %v971, %v1010
        %v1012 = vrcp.pop %v836
        %v1013 = vmul.f32 %v976, %v1012
        %v1014 = vrcp.pop %v838
        %v1015 = vmul.f32 %v981, %v1014
        %1016 = vst [vmem:[%s176] sm:$0xff] %v985
        %1017 = vst [vmem:[%s176 + $0x8] sm:$0xff] %v987
        %1018 = vst [vmem:[%s176 + $0x10] sm:$0xff] %v989
        %1019 = vst [vmem:[%s176 + $0x18] sm:$0xff] %v991
        %1020 = vst [vmem:[%s176 + $0x20] sm:$0xff] %v993
        %1021 = vst [vmem:[%s176 + $0x28] sm:$0xff] %v995
        %1022 = vst [vmem:[%s176 + $0x30] sm:$0xff] %v997
        %1023 = vst [vmem:[%s176 + $0x38] sm:$0xff] %v999
        %1024 = vst [vmem:[%s176 + $0x40] sm:$0xff] %v1001
        %1025 = vst [vmem:[%s176 + $0x48] sm:$0xff] %v1003
        %1026 = vst [vmem:[%s176 + $0x50] sm:$0xff] %v1005
        %1027 = vst [vmem:[%s176 + $0x58] sm:$0xff] %v1007
        %1028 = vst [vmem:[%s176 + $0x60] sm:$0xff] %v1009
        %1029 = vst [vmem:[%s176 + $0x68] sm:$0xff] %v1011
        %1030 = vst [vmem:[%s176 + $0x70] sm:$0xff] %v1013
        %1031 = vst [vmem:[%s176 + $0x78] sm:$0xff] %v1015
        %s1032 = sand.u32 %s75, 1
        %s1033 = scalar_lea.sflag [#allocation4], %s1032
        %s1034 = sand.u32 %s75, 1
        %s1035 = smul.addr %s1034, 128
        %s1036 = scalar_lea.vmem [#allocation7], %s1035
        // Predicated region
        $region37: #{tpu_custom_call.1} parent=27 // pred_check
          %p1037 = pneg %p85
        $region38: #{tpu_custom_call.1} parent=27 // pred_check_branch
          %1039 = sbr.rel (%p1037) target = $region40
        $region39: #{tpu_custom_call.1} parent=27 // pred_region
          %s1041 = ssub.s32 2048, 2048
          %1042 = vsyncadd %s1033, %s1041
          %s1043 = smul.addr %s20, 16
          %s1044 = smul.addr %s1043, 128
          %s1045 = scalar_lea.hbm %s2, %s1044
          %s1046 = sshll.u32 %s1036, 4
          %s1047 = int_to_ptr.vmem [resolvable:$true] %s1046
          %1052 = dma.vmem_to_hbm [thread:$0]  %s1047, 2048, %s1045, %s1033, 128, 128, 8
        $region40: #{tpu_custom_call.1} parent=27 // pred_fallthru
          _
      $region28: #{tpu_custom_call.1} parent=5 // pred_fallthru
        _
      %p1053 = scmp.le.s32.totalorder 2, %s15
      // Predicated region
      $region41: #{tpu_custom_call.1} parent=5 // pred_check
        %p1054 = pneg %p1053
      $region42: #{tpu_custom_call.1} parent=5 // pred_check_branch
        %1056 = sbr.rel (%p1054) target = $region44
      $region43: #{tpu_custom_call.1} parent=5 // pred_region
        %s1057 = ssub.s32 %s15, 2
        // Predicated region
        $region45: #{tpu_custom_call.1} parent=43 // pred_check
          %p1058 = pneg %p91
        $region46: #{tpu_custom_call.1} parent=43 // pred_check_branch
          %1060 = sbr.rel (%p1058) target = $region48
        $region47: #{tpu_custom_call.1} parent=43 // pred_region
          %s1061 = sand.u32 %s76, 1
          %s1062 = scalar_lea.sflag [#allocation4], %s1061
          %s1063 = sand.u32 %s76, 1
          %s1064 = smul.addr %s1063, 128
          %s1065 = scalar_lea.vmem [#allocation7], %s1064
          %1066 = dma.done %s1062, 2048
        $region48: #{tpu_custom_call.1} parent=43 // pred_fallthru
          _
      $region44: #{tpu_custom_call.1} parent=5 // pred_fallthru
        _
    $region6: #{tpu_custom_call.1} parent=1 // loop_footer
      %s19 = sadd.s32 1, %s15
    $region7: #{tpu_custom_call.1} parent=1 // loop_footer_branch
      %14 = sbr.rel target = $region3
    $region8: #{tpu_custom_call.1} parent=1 // loop_exit
      _
    %1067 = vsyncpa [#allocation3], 1
    %s1068 = scalar_lea.sflag [#allocation3], 1
    %1069 = vsyncpa %s1068, 1
    %1070 = vsyncpa [#allocation6], 1
    %1071 = vsyncpa [#allocation4], 1
    %s1072 = scalar_lea.sflag [#allocation4], 1
    %1073 = vsyncpa %s1072, 1

</llo_original>
